<compile_context>
chip_gen: v6e
topology: v6e:2x2x1
jax: 0.10.0
libtpu: 0.0.40
codegen_flags: <defaults>
</compile_context>

<pallas_src>
import math
import functools

import jax
import jax.numpy as jnp
from jax.experimental import pallas as pl
from jax.experimental.pallas import tpu as pltpu


_LANES = 128
_NEG = -1e30                       # finite "-inf": keeps online-LSE rescale NaN-free
_W_RESIDENT_BYTES = 6 * 2**20      # keep W resident if one copy fits in ~6 MiB
_VMEM_BUDGET = 28 * 2**20          # total tile budget (v7x: 64 MiB phys / 32 MiB scoped)


def _round_up(v, mult):
    return (v + mult - 1) // mult * mult


# --------------------------------------------------------------------------- #
# Kernel 1: row L2 normalization of the (padded) weight matrix W.
# --------------------------------------------------------------------------- #
def _row_normalize_kernel(v_ref, o_ref):
    v = v_ref[...]
    # F.normalize(v, p=2, dim=1): v / max(||v||, 1e-12) == v * rsqrt(||v||^2 + tiny)
    o_ref[...] = v * jax.lax.rsqrt(jnp.sum(v * v, axis=-1, keepdims=True) + 1e-24)


def _choose_row_tile(rows, cols):
    # HBM-bound pass: pick the biggest row tile (divides rows, fits ~8 MiB of
    # double-buffered in+out traffic).  rows is always a multiple of 8.
    for t in (1024, 512, 256, 128, 64, 32, 16, 8):
        if t <= rows and rows % t == 0 and 4 * (t * cols * 4) <= (8 << 20):
            return t
    return 8


def _row_normalize(v):
    rows, cols = v.shape
    row_tile = _choose_row_tile(rows, cols)
    return pl.pallas_call(
        _row_normalize_kernel,
        out_shape=jax.ShapeDtypeStruct((rows, cols), jnp.float32),
        grid_spec=pltpu.PrefetchScalarGridSpec(
            num_scalar_prefetch=0,
            grid=(rows // row_tile,),
            in_specs=[pl.BlockSpec((row_tile, cols), lambda r: (r, 0))],
            out_specs=pl.BlockSpec((row_tile, cols), lambda r: (r, 0)),
        ),
        compiler_params=pltpu.CompilerParams(dimension_semantics=("parallel",)),
    )(v)


# --------------------------------------------------------------------------- #
# Kernel 2: per-batch-tile arcface loss with online log-sum-exp over classes.
# --------------------------------------------------------------------------- #
def _arcface_kernel(x_ref, wn_ref, y_ref, out_ref, xn_sc, m_sc, l_sc, t_sc, *,
                    s, cos_m, sin_m, eps, n_rows, n_cls, mask_class_pad):
    i = pl.program_id(0)          # batch tile ("parallel")
    j = pl.program_id(1)          # class tile ("arbitrary" reduction)
    n_tile = x_ref.shape[0]
    c_tile = wn_ref.shape[0]

    @pl.when(j == 0)
    def _():
        # x tile is resident across the class loop: normalize it once and fold
        # the scale s in, so per-class-step work has no extra full-tile multiply.
        x = x_ref[...]
        inv = s * jax.lax.rsqrt(jnp.sum(x * x, axis=-1, keepdims=True) + 1e-24)
        xn_sc[...] = x * inv
        m_sc[...] = jnp.full(m_sc.shape, _NEG, dtype=jnp.float32)   # running max of s*cos
        l_sc[...] = jnp.zeros(l_sc.shape, jnp.float32)              # running rescaled exp-sum
        t_sc[...] = jnp.zeros(t_sc.shape, jnp.float32)              # target s*cos accumulator

    # (s * cos_theta) block: contract the shared feature axis directly (no
    # materialized transpose), f32 accumulate, explicit high precision (the
    # default TPU lowering of an f32 dot is single-pass bf16).
    scos = jax.lax.dot_general(
        xn_sc[...], wn_ref[...],
        dimension_numbers=(((1,), (1,)), ((), ())),
        preferred_element_type=jnp.float32,
        precision=jax.lax.Precision.HIGHEST)                        # (n_tile, c_tile)

    col = jax.lax.broadcasted_iota(jnp.int32, (n_tile, c_tile), 1) + j * c_tile
    y = y_ref[...]                                                  # (n_tile, 1) int32
    is_target = col == y

    # Gather the target s*cos (exactly one hit per row across the class loop).
    t_sc[...] += jnp.sum(jnp.where(is_target, scos, 0.0), axis=1, keepdims=True)

    # Exclusion mask: padded-class compares only emitted when padding exists.
    if mask_class_pad:
        excl = jnp.logical_and(jnp.logical_not(is_target), col < n_cls)
    else:
        excl = jnp.logical_not(is_target)
    z = jnp.where(excl, scos, _NEG)

    # Online (running-max) log-sum-exp over non-target classes.
    m_prev = m_sc[...]
    m_new = jnp.maximum(m_prev, jnp.max(z, axis=1, keepdims=True))
    l_sc[...] = (l_sc[...] * jnp.exp(m_prev - m_new)
                 + jnp.sum(jnp.exp(z - m_new), axis=1, keepdims=True))
    m_sc[...] = m_new

    @pl.when(j == pl.num_programs(1) - 1)
    def _():
        t = jnp.clip(t_sc[...] * (1.0 / s), -1.0 + eps, 1.0 - eps)
        # s * cos(acos(t) + m) == s * (t*cos(m) - sqrt(1 - t^2)*sin(m))
        numerator = s * (t * cos_m - jnp.sqrt(jnp.maximum(1.0 - t * t, 0.0)) * sin_m)
        # log(exp(numerator) + sum_{j != y} exp(s*cos_j)), evaluated stably.
        m_tot = jnp.maximum(m_sc[...], numerator)
        lse = m_tot + jnp.log(l_sc[...] * jnp.exp(m_sc[...] - m_tot)
                              + jnp.exp(numerator - m_tot))
        loss_rows = numerator - lse                                  # (n_tile, 1)
        row = jax.lax.broadcasted_iota(jnp.int32, loss_rows.shape, 0) + i * n_tile
        loss_rows = jnp.where(row < n_rows, loss_rows, 0.0)          # zero padded rows
        # Per-batch-tile partial sum (sublane reduce rides the XLU); emit a
        # small lane-dense (1, 8, 128) slab instead of per-row broadcast.
        tile_sum = jnp.sum(loss_rows)
        out_ref[...] = jnp.broadcast_to(jnp.reshape(tile_sum, (1, 1, 1)), out_ref.shape)


def _vmem_estimate(n_tile, c_tile, d_pad):
    dbl = 2  # double-buffered pipeline inputs/outputs
    inputs = dbl * (n_tile * d_pad + c_tile * d_pad + n_tile * 1) * 4
    outputs = dbl * (8 * _LANES) * 4
    scratch = (n_tile * d_pad + 3 * n_tile) * 4
    return inputs + outputs + scratch


# --------------------------------------------------------------------------- #
# Wrapper (matches AngularPenaltySMLoss.forward semantics).
# --------------------------------------------------------------------------- #
def angular_penalty_sm_loss(embedding, W, ground_truth, *, loss_type="arcface",
                            s=None, m=None, eps=1e-7, n_tile=None, c_tile=None):
    loss_type = loss_type.lower()
    assert loss_type in ("arcface", "sphereface", "cosface")
    if loss_type == "arcface":
        s = 64.0 if s is None else s
        m = 0.5 if m is None else m
    elif loss_type == "sphereface":
        s = 64.0 if s is None else s
        m = 1.35 if m is None else m
    else:  # cosface
        s = 30.0 if s is None else s
        m = 0.4 if m is None else m
    # NOTE: the reference forward() always applies the cos(acos(t)+m) margin
    # regardless of loss_type (only s, m differ); reproduced faithfully.

    N, D = embedding.shape
    C, D2 = W.shape
    assert D == D2
    assert ground_truth.shape == (N,)

    d_pad = _round_up(D, _LANES)

    # ---- batch tile ---------------------------------------------------------
    auto_n = n_tile is None
    n_tile = 256 if auto_n else n_tile
    n_tile = max(8, min(_round_up(n_tile, 8), _round_up(N, 8)))
    if auto_n and N > 8 and _round_up(N, n_tile) // n_tile < 2:
        # v7x has 2 TensorCores sharding the "parallel" batch axis: prefer >=2
        # batch tiles instead of one oversized tile when N is small.
        n_tile = _round_up((N + 1) // 2, 8)
    n_pad = _round_up(N, n_tile)

    # ---- class tile ---------------------------------------------------------
    c_pad_min = _round_up(C, _LANES)
    if c_tile is None:
        if c_pad_min * d_pad * 4 <= _W_RESIDENT_BYTES:
            c_tile = c_pad_min              # W fully resident: one HBM read total
        else:
            c_tile = min(512, c_pad_min)    # fill the 256x256 MXU, amortize steps
    else:
        c_tile = max(_LANES, min(_round_up(c_tile, _LANES), c_pad_min))
    c_pad = _round_up(C, c_tile)

    # ---- VMEM budget (sized against v7x's 64 MiB physical VMEM) ------------
    while _vmem_estimate(n_tile, c_tile, d_pad) > _VMEM_BUDGET and c_tile > _LANES:
        c_tile = max(_LANES, c_tile // 2)
        c_pad = _round_up(C, c_tile)
    while _vmem_estimate(n_tile, c_tile, d_pad) > _VMEM_BUDGET and n_tile > 8:
        n_tile = max(8, _round_up(n_tile // 2, 8))
        n_pad = _round_up(N, n_tile)
    est = _vmem_estimate(n_tile, c_tile, d_pad)
    vmem_limit = int(max(32 << 20, min(44 << 20, est + (8 << 20))))

    x = jnp.pad(embedding.astype(jnp.float32), ((0, n_pad - N), (0, d_pad - D)))
    w = jnp.pad(W.astype(jnp.float32), ((0, c_pad - C), (0, d_pad - D)))
    y2d = jnp.pad(ground_truth.astype(jnp.int32), (0, n_pad - N)).reshape(n_pad, 1)

    # Normalize W once; every batch tile reuses the normalized rows.
    w_n = _row_normalize(w)

    kernel = functools.partial(
        _arcface_kernel, s=float(s), cos_m=math.cos(m), sin_m=math.sin(m),
        eps=float(eps), n_rows=N, n_cls=C, mask_class_pad=(c_pad != C))

    n_bt = n_pad // n_tile
    partials = pl.pallas_call(
        kernel,
        out_shape=jax.ShapeDtypeStruct((n_bt, 8, _LANES), jnp.float32),
        grid_spec=pltpu.PrefetchScalarGridSpec(
            num_scalar_prefetch=0,
            grid=(n_bt, c_pad // c_tile),
            in_specs=[
                pl.BlockSpec((n_tile, d_pad), lambda i, j: (i, 0)),  # x: resident over class loop
                pl.BlockSpec((c_tile, d_pad), lambda i, j: (j, 0)),  # normalized W (resident if 1 tile)
                pl.BlockSpec((n_tile, 1), lambda i, j: (i, 0)),      # labels
            ],
            out_specs=pl.BlockSpec((1, 8, _LANES), lambda i, j: (i, 0, 0)),
            scratch_shapes=[
                pltpu.VMEM((n_tile, d_pad), jnp.float32),   # s * normalized x tile
                pltpu.VMEM((n_tile, 1), jnp.float32),       # running max
                pltpu.VMEM((n_tile, 1), jnp.float32),       # running exp-sum
                pltpu.VMEM((n_tile, 1), jnp.float32),       # target s*cos
            ],
        ),
        compiler_params=pltpu.CompilerParams(
            dimension_semantics=("parallel", "arbitrary"),
            vmem_limit_bytes=vmem_limit),
    )(x, w_n, y2d)

    # Finish the mean on the wrapper side (padded rows were zeroed in-kernel).
    return -jnp.sum(partials[:, 0, 0]) / N


# --------------------------------------------------------------------------- #
# Pure-JAX reference (mirrors the PyTorch forward).
# --------------------------------------------------------------------------- #
def _reference_loss(embedding, W, ground_truth, *, s=64.0, m=0.5, eps=1e-7):
    x_n = embedding / jnp.maximum(jnp.linalg.norm(embedding, axis=1, keepdims=True), 1e-12)
    w_n = W / jnp.maximum(jnp.linalg.norm(W, axis=1, keepdims=True), 1e-12)
    cos_theta = x_n @ w_n.T
    t = jnp.clip(cos_theta[jnp.arange(embedding.shape[0]), ground_truth],
                 -1.0 + eps, 1.0 - eps)
    numerator = s * jnp.cos(jnp.arccos(t) + m)
    mask = jax.nn.one_hot(ground_truth, W.shape[0], dtype=bool)
    excl_sum = jnp.sum(jnp.where(mask, 0.0, jnp.exp(s * cos_theta)), axis=1)
    L = numerator - jnp.log(jnp.exp(numerator) + excl_sum)
    return -jnp.mean(L)


def _make_inputs(key, n, d, c):
    k_x, k_w, k_y = jax.random.split(key, 3)
    embedding = jax.random.normal(k_x, (n, d), dtype=jnp.float32)
    bound = math.sqrt(6.0 / (d + c))  # deterministic xavier_uniform_-style init
    W = jax.random.uniform(k_w, (c, d), minval=-bound, maxval=bound, dtype=jnp.float32)
    ground_truth = jax.random.randint(k_y, (n,), 0, c, dtype=jnp.int32)
    return embedding, W, ground_truth


if __name__ == "__main__":
    key = jax.random.PRNGKey(0)
    k1, k2 = jax.random.split(key)

    # Case 1: tiny shapes implied by the module (single tile along each axis,
    # W-resident fast path).
    emb, W, gt = _make_inputs(k1, n=8, d=32, c=16)
    loss = jax.block_until_ready(angular_penalty_sm_loss(emb, W, gt, loss_type="arcface"))
    ref = _reference_loss(emb, W, gt)
    assert jnp.allclose(loss, ref, rtol=5e-4, atol=5e-4), (loss, ref)

    # Case 2: auto tiling — >=2 batch tiles (v7x-friendly), W resident (single
    # class tile, fetched from HBM once).
    emb2, W2, gt2 = _make_inputs(k2, n=200, d=72, c=150)
    loss2 = jax.block_until_ready(angular_penalty_sm_loss(emb2, W2, gt2, loss_type="arcface"))
    ref2 = _reference_loss(emb2, W2, gt2)
    assert jnp.allclose(loss2, ref2, rtol=5e-4, atol=5e-4), (loss2, ref2)

    # Case 3: force multiple class tiles (exercises the online log-sum-exp
    # reduction + class-padding mask) and multiple batch tiles.
    loss3 = jax.block_until_ready(
        angular_penalty_sm_loss(emb2, W2, gt2, loss_type="arcface", n_tile=64, c_tile=128))
    assert jnp.allclose(loss3, ref2, rtol=5e-4, atol=5e-4), (loss3, ref2)

    print("KERNEL_OK")
</pallas_src>

<mosaic_0001>
module attributes {stable_mosaic.version = 11 : i64} {
  func.func @_row_normalize_kernel(%arg0: i32, %arg1: memref<128x128xf32, #tpu.memory_space<vmem>>, %arg2: memref<128x128xf32, #tpu.memory_space<vmem>>) attributes {dimension_semantics = [#tpu.dimension_semantics<parallel>], iteration_bounds = array<i64: 1>, scalar_prefetch = 0 : i64, scratch_operands = 0 : i64, tpu.core_type = #tpu.core_type<tc>, window_params = [{transform_indices = @transform_0, window_bounds = array<i64: 128, 128>}, {transform_indices = @transform_1, window_bounds = array<i64: 128, 128>}]} {
    %c0 = arith.constant 0 : index
    %c0_0 = arith.constant 0 : index
    %0 = vector.load %arg1[%c0, %c0_0] : memref<128x128xf32, #tpu.memory_space<vmem>>, vector<128x128xf32>
    %1 = arith.mulf %0, %0 : vector<128x128xf32>
    %cst = arith.constant dense<0.000000e+00> : vector<128xf32>
    %2 = vector.multi_reduction <add>, %1, %cst [1] : vector<128x128xf32> to vector<128xf32>
    %3 = vector.shape_cast %2 : vector<128xf32> to vector<128x1xf32>
    %cst_1 = arith.constant 1.000000e-24 : f32
    %4 = vector.broadcast %cst_1 : f32 to vector<128x1xf32>
    %5 = arith.addf %3, %4 : vector<128x1xf32>
    %6 = math.rsqrt %5 : vector<128x1xf32>
    %7 = vector.broadcast %6 : vector<128x1xf32> to vector<128x128xf32>
    %8 = arith.mulf %0, %7 : vector<128x128xf32>
    %c0_2 = arith.constant 0 : index
    %c0_3 = arith.constant 0 : index
    %9 = vector.load %arg2[%c0_2, %c0_3] : memref<128x128xf32, #tpu.memory_space<vmem>>, vector<128x128xf32>
    tpu.vector_store %arg2[%c0_2, %c0_3], %8 {strides = array<i32>} : memref<128x128xf32, #tpu.memory_space<vmem>>, vector<128x128xf32>,
    return
  }
  func.func @transform_0(%arg0: i32) -> (i32, i32) {
    %c0_i32 = arith.constant 0 : i32
    %c0_i32_0 = arith.constant 0 : i32
    return %arg0, %c0_i32 : i32, i32
  }
  func.func @transform_1(%arg0: i32) -> (i32, i32) {
    %c0_i32 = arith.constant 0 : i32
    %c0_i32_0 = arith.constant 0 : i32
    return %arg0, %c0_i32 : i32, i32
  }
}

</mosaic_0001>

<llo_original>
// kernel: tpu_custom_call.1
$region0: #{tpu_custom_call.1}
  #allocation0 [shape = 'u32[]', space=smem, size = 0x4, offset = 0x4, fixed_abs, tag = 'smem constant byte address 0x4 - core index']
  #allocation1 [shape = 'u32[144,128]{1,0:T(1,128)}', space=vmem, size = 0x12000, scoped, tag = 'internal scratch']
  %s0 = inlined_call_operand.hbm [shape: f32[128,128], index: 0, kind: input, shape index: {}]
  %s1 = inlined_call_operand.hbm [shape: f32[128,128], index: 1, kind: output, shape index: {}]
  %s2 = sld [smem:[#allocation0]]
  $region18: #{tpu_custom_call.1} parent=0
    _
  %s4 = ssub.s32 1, %s2
  %s5 = scalar_select 0, %s4, %s2
  $region1: #{tpu_custom_call.1} parent=0
    #allocation2 [shape = 'u8[65536]{0}', space=vmem, size = 0x10000, scoped, tag = 'input window, operand 0, single buffered']
    #allocation3 [shape = 's32[1]{0}', space=sflag, size = 0x4, scoped, tag = 'scoped memory for tpu_custom_call.1']
    #allocation4 [shape = 's32[1]{0}', space=sflag, size = 0x4, scoped, tag = 'scoped memory for tpu_custom_call.1']
    #allocation5 [shape = 'u8[65536]{0}', space=vmem, size = 0x10000, scoped, tag = 'output window, operand 0, single buffered']
    %6 = vsyncpa [#allocation3], 0
    %7 = vsyncpa [#allocation4], 0
    // Predicated region
    $region2: #{tpu_custom_call.1} parent=1 // pred_check
      _
    $region3: #{tpu_custom_call.1} parent=1 // pred_check_branch
      %9 = sbr.rel (0) target = $region5
    $region4: #{tpu_custom_call.1} parent=1 // pred_region
      %s11 = ssub.s32 2048, 2048
      %12 = vsyncadd [#allocation3], %s11
      %s13 = sshll.u32 [#allocation2], 4
      %s14 = int_to_ptr.vmem [resolvable:$true] %s13
      %19 = dma.hbm_to_vmem [thread:$0]  %s0, 2048, %s14, [#allocation3], 128, 128, 8
    $region5: #{tpu_custom_call.1} parent=1 // pred_fallthru
      _
    // Predicated region
    $region6: #{tpu_custom_call.1} parent=1 // pred_check
      _
    $region7: #{tpu_custom_call.1} parent=1 // pred_check_branch
      %21 = sbr.rel (0) target = $region9
    $region8: #{tpu_custom_call.1} parent=1 // pred_region
      %22 = dma.done [#allocation3], 2048
    $region9: #{tpu_custom_call.1} parent=1 // pred_fallthru
      _
    %v23 = vld [vmem:[#allocation2] sm:$0xff]
    %v24 = vld [vmem:[#allocation2 + $0x8] sm:$0xff]
    %v25 = vld [vmem:[#allocation2 + $0x10] sm:$0xff]
    %v26 = vld [vmem:[#allocation2 + $0x18] sm:$0xff]
    %v27 = vld [vmem:[#allocation2 + $0x20] sm:$0xff]
    %v28 = vld [vmem:[#allocation2 + $0x28] sm:$0xff]
    %v29 = vld [vmem:[#allocation2 + $0x30] sm:$0xff]
    %v30 = vld [vmem:[#allocation2 + $0x38] sm:$0xff]
    %v31 = vld [vmem:[#allocation2 + $0x40] sm:$0xff]
    %v32 = vld [vmem:[#allocation2 + $0x48] sm:$0xff]
    %v33 = vld [vmem:[#allocation2 + $0x50] sm:$0xff]
    %v34 = vld [vmem:[#allocation2 + $0x58] sm:$0xff]
    %v35 = vld [vmem:[#allocation2 + $0x60] sm:$0xff]
    %v36 = vld [vmem:[#allocation2 + $0x68] sm:$0xff]
    %v37 = vld [vmem:[#allocation2 + $0x70] sm:$0xff]
    %v38 = vld [vmem:[#allocation2 + $0x78] sm:$0xff]
    %v39 = vmul.f32 %v23, %v23
    %v40 = vmul.f32 %v24, %v24
    %v41 = vmul.f32 %v25, %v25
    %v42 = vmul.f32 %v26, %v26
    %v43 = vmul.f32 %v27, %v27
    %v44 = vmul.f32 %v28, %v28
    %v45 = vmul.f32 %v29, %v29
    %v46 = vmul.f32 %v30, %v30
    %v47 = vmul.f32 %v31, %v31
    %v48 = vmul.f32 %v32, %v32
    %v49 = vmul.f32 %v33, %v33
    %v50 = vmul.f32 %v34, %v34
    %v51 = vmul.f32 %v35, %v35
    %v52 = vmul.f32 %v36, %v36
    %v53 = vmul.f32 %v37, %v37
    %v54 = vmul.f32 %v38, %v38
    %55 = vadd.xlane.f32.xlu0 %v39
    %v56 = vpop.xlane.xlu0 %55
    %57 = vadd.xlane.f32.xlu0 %v40
    %v58 = vpop.xlane.xlu0 %57
    %59 = vadd.xlane.f32.xlu0 %v41
    %v60 = vpop.xlane.xlu0 %59
    %61 = vadd.xlane.f32.xlu0 %v42
    %v62 = vpop.xlane.xlu0 %61
    %63 = vadd.xlane.f32.xlu0 %v43
    %v64 = vpop.xlane.xlu0 %63
    %65 = vadd.xlane.f32.xlu0 %v44
    %v66 = vpop.xlane.xlu0 %65
    %67 = vadd.xlane.f32.xlu0 %v45
    %v68 = vpop.xlane.xlu0 %67
    %69 = vadd.xlane.f32.xlu0 %v46
    %v70 = vpop.xlane.xlu0 %69
    %71 = vadd.xlane.f32.xlu0 %v47
    %v72 = vpop.xlane.xlu0 %71
    %73 = vadd.xlane.f32.xlu0 %v48
    %v74 = vpop.xlane.xlu0 %73
    %75 = vadd.xlane.f32.xlu0 %v49
    %v76 = vpop.xlane.xlu0 %75
    %77 = vadd.xlane.f32.xlu0 %v50
    %v78 = vpop.xlane.xlu0 %77
    %79 = vadd.xlane.f32.xlu0 %v51
    %v80 = vpop.xlane.xlu0 %79
    %81 = vadd.xlane.f32.xlu0 %v52
    %v82 = vpop.xlane.xlu0 %81
    %83 = vadd.xlane.f32.xlu0 %v53
    %v84 = vpop.xlane.xlu0 %83
    %85 = vadd.xlane.f32.xlu0 %v54
    %v86 = vpop.xlane.xlu0 %85
    %v87 = vadd.f32 %v56, 1e-24
    %v88 = vadd.f32 %v58, 1e-24
    %v89 = vadd.f32 %v60, 1e-24
    %v90 = vadd.f32 %v62, 1e-24
    %v91 = vadd.f32 %v64, 1e-24
    %v92 = vadd.f32 %v66, 1e-24
    %v93 = vadd.f32 %v68, 1e-24
    %v94 = vadd.f32 %v70, 1e-24
    %v95 = vadd.f32 %v72, 1e-24
    %v96 = vadd.f32 %v74, 1e-24
    %v97 = vadd.f32 %v76, 1e-24
    %v98 = vadd.f32 %v78, 1e-24
    %v99 = vadd.f32 %v80, 1e-24
    %v100 = vadd.f32 %v82, 1e-24
    %v101 = vadd.f32 %v84, 1e-24
    %v102 = vadd.f32 %v86, 1e-24
    %v103 = vrsqrt.pop %v87
    %v104 = vrsqrt.pop %v88
    %v105 = vrsqrt.pop %v89
    %v106 = vrsqrt.pop %v90
    %v107 = vrsqrt.pop %v91
    %v108 = vrsqrt.pop %v92
    %v109 = vrsqrt.pop %v93
    %v110 = vrsqrt.pop %v94
    %v111 = vrsqrt.pop %v95
    %v112 = vrsqrt.pop %v96
    %v113 = vrsqrt.pop %v97
    %v114 = vrsqrt.pop %v98
    %v115 = vrsqrt.pop %v99
    %v116 = vrsqrt.pop %v100
    %v117 = vrsqrt.pop %v101
    %v118 = vrsqrt.pop %v102
    %v119 = vmul.f32 %v23, %v103
    %v120 = vmul.f32 %v24, %v104
    %v121 = vmul.f32 %v25, %v105
    %v122 = vmul.f32 %v26, %v106
    %v123 = vmul.f32 %v27, %v107
    %v124 = vmul.f32 %v28, %v108
    %v125 = vmul.f32 %v29, %v109
    %v126 = vmul.f32 %v30, %v110
    %v127 = vmul.f32 %v31, %v111
    %v128 = vmul.f32 %v32, %v112
    %v129 = vmul.f32 %v33, %v113
    %v130 = vmul.f32 %v34, %v114
    %v131 = vmul.f32 %v35, %v115
    %v132 = vmul.f32 %v36, %v116
    %v133 = vmul.f32 %v37, %v117
    %v134 = vmul.f32 %v38, %v118
    %135 = vst [vmem:[#allocation5] sm:$0xff] %v119
    %136 = vst [vmem:[#allocation5 + $0x8] sm:$0xff] %v120
    %137 = vst [vmem:[#allocation5 + $0x10] sm:$0xff] %v121
    %138 = vst [vmem:[#allocation5 + $0x18] sm:$0xff] %v122
    %139 = vst [vmem:[#allocation5 + $0x20] sm:$0xff] %v123
    %140 = vst [vmem:[#allocation5 + $0x28] sm:$0xff] %v124
    %141 = vst [vmem:[#allocation5 + $0x30] sm:$0xff] %v125
    %142 = vst [vmem:[#allocation5 + $0x38] sm:$0xff] %v126
    %143 = vst [vmem:[#allocation5 + $0x40] sm:$0xff] %v127
    %144 = vst [vmem:[#allocation5 + $0x48] sm:$0xff] %v128
    %145 = vst [vmem:[#allocation5 + $0x50] sm:$0xff] %v129
    %146 = vst [vmem:[#allocation5 + $0x58] sm:$0xff] %v130
    %147 = vst [vmem:[#allocation5 + $0x60] sm:$0xff] %v131
    %148 = vst [vmem:[#allocation5 + $0x68] sm:$0xff] %v132
    %149 = vst [vmem:[#allocation5 + $0x70] sm:$0xff] %v133
    %150 = vst [vmem:[#allocation5 + $0x78] sm:$0xff] %v134
    // Predicated region
    $region10: #{tpu_custom_call.1} parent=1 // pred_check
      _
    $region11: #{tpu_custom_call.1} parent=1 // pred_check_branch
      %152 = sbr.rel (0) target = $region13
    $region12: #{tpu_custom_call.1} parent=1 // pred_region
      %s154 = ssub.s32 2048, 2048
      %155 = vsyncadd [#allocation4], %s154
      %s156 = sshll.u32 [#allocation5], 4
      %s157 = int_to_ptr.vmem [resolvable:$true] %s156
      %162 = dma.vmem_to_hbm [thread:$0]  %s157, 2048, %s1, [#allocation4], 128, 128, 8
    $region13: #{tpu_custom_call.1} parent=1 // pred_fallthru
      _
    // Predicated region
    $region14: #{tpu_custom_call.1} parent=1 // pred_check
      _
    $region15: #{tpu_custom_call.1} parent=1 // pred_check_branch
      %164 = sbr.rel (0) target = $region17
    $region16: #{tpu_custom_call.1} parent=1 // pred_region
      %165 = dma.done [#allocation4], 2048
    $region17: #{tpu_custom_call.1} parent=1 // pred_fallthru
      _
    %166 = vsyncpa [#allocation3], 1
    %167 = vsyncpa [#allocation4], 1

</llo_original>
